<compile_context>
chip_gen: v7x
topology: tpu7x:2x2x1
jax: 0.10.0
libtpu: 0.0.40
codegen_flags: <defaults>
</compile_context>

<pallas_src>
import jax
import jax.numpy as jnp
from jax.experimental import pallas as pl
from jax.experimental.pallas import tpu as pltpu

EPS = 1e-5
F_IN = 8            # input features
H1 = 128            # layer-1 width (already lane-dense)
OUT = 16            # true output features of layers 2/3
NPAD = 128          # lane-dense padded width of the final layer / output store
MXU_STATS_MIN_B = 64  # use MXU ones-matmul batch reductions at/above this batch


def _bn_relu_fused(h, gamma, beta, ones_row):
    """Training-mode BatchNorm1d + ReLU: one-pass stats, folded scale/shift.

    var = E[h^2] - mu^2 (biased, over the batch axis), clamped at 0.
    Padded (all-zero) lanes stay exactly 0 because mu = 0, h*scale = 0 and the
    padded beta is 0.  For large batch tiles the two batch reductions run on
    the MXU (ones-row matmul) to keep them off the XLU.
    """
    inv_b = 1.0 / h.shape[0]
    if ones_row is None:
        mu = jnp.sum(h, axis=0, keepdims=True) * inv_b
        ex2 = jnp.sum(h * h, axis=0, keepdims=True) * inv_b
    else:
        mu = jnp.dot(ones_row, h, preferred_element_type=jnp.float32) * inv_b
        ex2 = jnp.dot(ones_row, h * h, preferred_element_type=jnp.float32) * inv_b
    var = jnp.maximum(ex2 - mu * mu, 0.0)
    scale = gamma * jax.lax.rsqrt(var + EPS)
    shift = beta - mu * scale
    return jnp.maximum(h * scale + shift, 0.0)


def landmark_kernel(x_ref, w13_ref, w2_ref, bn_ref, o_ref):
    x = x_ref[...]        # (B, 8)   float32
    w13 = w13_ref[...]    # (24, 128): rows 0:8 = w1, rows 8:24 = w3 (cols 16: are 0)
    w2 = w2_ref[...]      # (128, 16)
    bn = bn_ref[...]      # (8, 128) packed BN rows: g1, be1, g2, be2, g3, be3, pad, pad

    B = x.shape[0]
    # Hoisted once; MXU-based batch reductions only pay off at larger tiles.
    ones_row = jnp.ones((1, B), jnp.float32) if B >= MXU_STATS_MIN_B else None

    w1 = w13[0:F_IN, :]                 # (8, 128)
    w3 = w13[F_IN:F_IN + OUT, :]        # (16, 128), pad columns are exact zeros

    g1, be1 = bn[0:1, :], bn[1:2, :]            # (1, 128)
    g2, be2 = bn[2:3, :OUT], bn[3:4, :OUT]      # (1, 16)
    g3, be3 = bn[4:5, :], bn[5:6, :]            # (1, 128), pad beta is exact zero

    # Layer 1: Linear(8 -> 128) [bias folded away by training-mode BN] + BN + ReLU
    h = jnp.dot(x, w1, preferred_element_type=jnp.float32)
    h = _bn_relu_fused(h, g1, be1, ones_row)

    # Layer 2: Linear(128 -> 16) + BN + ReLU — narrow (B,16) intermediate stays in VMEM
    h = jnp.dot(h, w2, preferred_element_type=jnp.float32)
    h = _bn_relu_fused(h, g2, be2, ones_row)

    # Layer 3: Linear(16 -> 16), N padded to 128 so the output store is a full-lane vst
    h = jnp.dot(h, w3, preferred_element_type=jnp.float32)
    h = _bn_relu_fused(h, g3, be3, ones_row)

    o_ref[...] = h        # (B, 128) lane-dense store; real features are [:, :16]


def pack_params_for_kernel(p):
    """Pack weights / BN params into the kernel's 3 dense operands.

    w13 (24,128): rows 0:8 = w1, rows 8:24 = w3 zero-padded to 128 columns.
    bn  (8,128):  rows [g1, be1, g2, be2, g3, be3, 0, 0]; padded entries of
    w3 and be3 MUST be exactly 0 so the padded output lanes stay exactly 0.
    Linear biases are intentionally dropped: training-mode BN subtracts the
    batch mean, so per-feature constant biases cancel exactly.
    """
    w13 = jnp.zeros((F_IN + OUT, NPAD), jnp.float32)
    w13 = w13.at[:F_IN, :].set(p["w1"])
    w13 = w13.at[F_IN:, :OUT].set(p["w3"])

    bn = jnp.zeros((8, NPAD), jnp.float32)
    bn = bn.at[0, :].set(p["g1"][0])
    bn = bn.at[1, :].set(p["be1"][0])
    bn = bn.at[2, :OUT].set(p["g2"][0])
    bn = bn.at[3, :OUT].set(p["be2"][0])
    bn = bn.at[4, :OUT].set(p["g3"][0])
    bn = bn.at[5, :OUT].set(p["be3"][0])

    return dict(w13=w13, w2=p["w2"], bn=bn)


def _vmem_limit_bytes(b):
    """Budget = resident operands + live activations with 2x margin, clamped
    to ~3/4 of physical VMEM (≈48 MiB on v7x, ≈96 MiB on v5e/v6e)."""
    try:
        phys = int(getattr(pltpu.get_tpu_info(), "vmem_capacity_bytes", 64 << 20))
    except Exception:  # no info available: assume the smallest (v7x) VMEM
        phys = 64 << 20
    operand_bytes = 4 * (b * F_IN + (F_IN + OUT) * NPAD + H1 * OUT + 8 * NPAD + b * NPAD)
    act_bytes = 4 * b * (NPAD + OUT + NPAD)
    need = 2 * (operand_bytes + act_bytes) + (4 << 20)
    cap = (phys * 3) // 4
    return int(max(min(need, cap), min(16 << 20, cap)))


def landmark_forward(x, kp):
    """x: (B, 8) float32.  kp: packed kernel params from pack_params_for_kernel."""
    B = x.shape[0]

    flops = 2 * B * (F_IN * H1 + H1 * OUT + OUT * NPAD) + 6 * B * (H1 + OUT + NPAD)
    bytes_accessed = 4 * (B * F_IN + (F_IN + OUT) * NPAD + H1 * OUT + 8 * NPAD + B * NPAD)
    transcendentals = H1 + OUT + NPAD   # one rsqrt row per BN

    out = pl.pallas_call(
        landmark_kernel,
        out_shape=jax.ShapeDtypeStruct((B, NPAD), jnp.float32),
        cost_estimate=pl.CostEstimate(
            flops=int(flops),
            transcendentals=int(transcendentals),
            bytes_accessed=int(bytes_accessed),
        ),
        compiler_params=pltpu.CompilerParams(vmem_limit_bytes=_vmem_limit_bytes(B)),
        # Small shapes: default BlockSpecs place every operand as a single
        # full-array VMEM block (no grid needed).
    )(x, kp["w13"], kp["w2"], kp["bn"])
    return out[:, :OUT]


def init_params(key):
    """Deterministic synthetic init matching the module's parameter shapes.

    nn.Linear(in, out): weight (out, in), bias (out,).  We store the weight
    transposed as (in, out) and biases / BN params as (1, out) rows.  Biases
    are kept only for the reference (they cancel inside training-mode BN).
    """
    ks = jax.random.split(key, 6)

    def linear(kw, kb, fin, fout):
        bound = 1.0 / (fin ** 0.5)  # PyTorch-style uniform bound
        w = jax.random.uniform(kw, (fin, fout), jnp.float32, -bound, bound)
        b = jax.random.uniform(kb, (1, fout), jnp.float32, -bound, bound)
        return w, b

    w1, b1 = linear(ks[0], ks[1], F_IN, H1)
    w2, b2 = linear(ks[2], ks[3], H1, OUT)
    w3, b3 = linear(ks[4], ks[5], OUT, OUT)

    return dict(
        w1=w1, b1=b1, g1=jnp.ones((1, H1), jnp.float32), be1=jnp.zeros((1, H1), jnp.float32),
        w2=w2, b2=b2, g2=jnp.ones((1, OUT), jnp.float32), be2=jnp.zeros((1, OUT), jnp.float32),
        w3=w3, b3=b3, g3=jnp.ones((1, OUT), jnp.float32), be3=jnp.zeros((1, OUT), jnp.float32),
    )


def reference_forward(x, p):
    """Pure-JAX reference with exact PyTorch forward semantics
    (Linear WITH bias, two-pass training-mode BN)."""
    def bn_relu(h, g, be):
        mu = h.mean(0, keepdims=True)
        var = h.var(0, keepdims=True)  # biased
        return jnp.maximum((h - mu) * jax.lax.rsqrt(var + EPS) * g + be, 0.0)

    h = bn_relu(x @ p["w1"] + p["b1"], p["g1"], p["be1"])
    h = bn_relu(h @ p["w2"] + p["b2"], p["g2"], p["be2"])
    h = bn_relu(h @ p["w3"] + p["b3"], p["g3"], p["be3"])
    return h


if __name__ == "__main__":
    key = jax.random.PRNGKey(0)
    kx, kp = jax.random.split(key)

    B = 8  # batch (BatchNorm1d training mode needs B > 1); sublane-aligned
    x = jax.random.normal(kx, (B, F_IN), dtype=jnp.float32)
    params = init_params(kp)
    kernel_params = pack_params_for_kernel(params)

    fwd = jax.jit(landmark_forward)
    out = jax.block_until_ready(fwd(x, kernel_params))

    ref = reference_forward(x, params)
    assert out.shape == (B, OUT), out.shape
    max_err = float(jnp.max(jnp.abs(out - ref)))
    assert jnp.allclose(out, ref, atol=5e-4, rtol=5e-4), f"max abs err = {max_err}"
    print("KERNEL_OK")
</pallas_src>

<mosaic_0001>
module attributes {stable_mosaic.version = 11 : i64} {
  func.func @landmark_kernel(%arg0: memref<8x8xf32, #tpu.memory_space<vmem>>, %arg1: memref<24x128xf32, #tpu.memory_space<vmem>>, %arg2: memref<128x16xf32, #tpu.memory_space<vmem>>, %arg3: memref<8x128xf32, #tpu.memory_space<vmem>>, %arg4: memref<8x128xf32, #tpu.memory_space<vmem>>) attributes {dimension_semantics = [], scalar_prefetch = 0 : i64, scratch_operands = 0 : i64, tpu.core_type = #tpu.core_type<tc>} {
    %c0 = arith.constant 0 : index
    %c0_0 = arith.constant 0 : index
    %0 = vector.load %arg0[%c0, %c0_0] : memref<8x8xf32, #tpu.memory_space<vmem>>, vector<8x8xf32>
    %c0_1 = arith.constant 0 : index
    %c0_2 = arith.constant 0 : index
    %1 = vector.load %arg1[%c0_1, %c0_2] : memref<24x128xf32, #tpu.memory_space<vmem>>, vector<24x128xf32>
    %c0_3 = arith.constant 0 : index
    %c0_4 = arith.constant 0 : index
    %2 = vector.load %arg2[%c0_3, %c0_4] : memref<128x16xf32, #tpu.memory_space<vmem>>, vector<128x16xf32>
    %c0_5 = arith.constant 0 : index
    %c0_6 = arith.constant 0 : index
    %3 = vector.load %arg3[%c0_5, %c0_6] : memref<8x128xf32, #tpu.memory_space<vmem>>, vector<8x128xf32>
    %4 = vector.extract_strided_slice %1 {offsets = [0, 0], sizes = [8, 128], strides = [1, 1]} : vector<24x128xf32> to vector<8x128xf32>
    %5 = vector.extract_strided_slice %1 {offsets = [8, 0], sizes = [16, 128], strides = [1, 1]} : vector<24x128xf32> to vector<16x128xf32>
    %6 = vector.extract_strided_slice %3 {offsets = [0, 0], sizes = [1, 128], strides = [1, 1]} : vector<8x128xf32> to vector<1x128xf32>
    %7 = vector.extract_strided_slice %3 {offsets = [1, 0], sizes = [1, 128], strides = [1, 1]} : vector<8x128xf32> to vector<1x128xf32>
    %8 = vector.extract_strided_slice %3 {offsets = [2, 0], sizes = [1, 16], strides = [1, 1]} : vector<8x128xf32> to vector<1x16xf32>
    %9 = vector.extract_strided_slice %3 {offsets = [3, 0], sizes = [1, 16], strides = [1, 1]} : vector<8x128xf32> to vector<1x16xf32>
    %10 = vector.extract_strided_slice %3 {offsets = [4, 0], sizes = [1, 128], strides = [1, 1]} : vector<8x128xf32> to vector<1x128xf32>
    %11 = vector.extract_strided_slice %3 {offsets = [5, 0], sizes = [1, 128], strides = [1, 1]} : vector<8x128xf32> to vector<1x128xf32>
    %cst = arith.constant dense<0.000000e+00> : vector<8x128xf32>
    %12 = tpu.matmul %0, %4, %cst {dimension_numbers = #tpu.dot_dimension_numbers<[1], [0], [0], [1], [0, 0, 1, 1], [], []>} : vector<8x8xf32>, vector<8x128xf32>, vector<8x128xf32> -> vector<8x128xf32>
    %cst_7 = arith.constant dense<0.000000e+00> : vector<128xf32>
    %13 = vector.multi_reduction <add>, %12, %cst_7 [0] : vector<8x128xf32> to vector<128xf32>
    %14 = vector.shape_cast %13 : vector<128xf32> to vector<1x128xf32>
    %cst_8 = arith.constant 1.250000e-01 : f32
    %15 = vector.broadcast %cst_8 : f32 to vector<1x128xf32>
    %16 = arith.mulf %14, %15 : vector<1x128xf32>
    %17 = arith.mulf %12, %12 : vector<8x128xf32>
    %cst_9 = arith.constant dense<0.000000e+00> : vector<128xf32>
    %18 = vector.multi_reduction <add>, %17, %cst_9 [0] : vector<8x128xf32> to vector<128xf32>
    %19 = vector.shape_cast %18 : vector<128xf32> to vector<1x128xf32>
    %cst_10 = arith.constant 1.250000e-01 : f32
    %20 = vector.broadcast %cst_10 : f32 to vector<1x128xf32>
    %21 = arith.mulf %19, %20 : vector<1x128xf32>
    %22 = arith.mulf %16, %16 : vector<1x128xf32>
    %23 = arith.subf %21, %22 : vector<1x128xf32>
    %cst_11 = arith.constant 0.000000e+00 : f32
    %24 = vector.broadcast %cst_11 : f32 to vector<1x128xf32>
    %25 = arith.maximumf %23, %24 : vector<1x128xf32>
    %cst_12 = arith.constant 9.99999974E-6 : f32
    %26 = vector.broadcast %cst_12 : f32 to vector<1x128xf32>
    %27 = arith.addf %25, %26 : vector<1x128xf32>
    %28 = math.rsqrt %27 : vector<1x128xf32>
    %29 = arith.mulf %6, %28 : vector<1x128xf32>
    %30 = arith.mulf %16, %29 : vector<1x128xf32>
    %31 = arith.subf %7, %30 : vector<1x128xf32>
    %32 = vector.broadcast %29 : vector<1x128xf32> to vector<8x128xf32>
    %33 = arith.mulf %12, %32 : vector<8x128xf32>
    %34 = vector.broadcast %31 : vector<1x128xf32> to vector<8x128xf32>
    %35 = arith.addf %33, %34 : vector<8x128xf32>
    %cst_13 = arith.constant 0.000000e+00 : f32
    %36 = vector.broadcast %cst_13 : f32 to vector<8x128xf32>
    %37 = arith.maximumf %35, %36 : vector<8x128xf32>
    %cst_14 = arith.constant dense<0.000000e+00> : vector<8x16xf32>
    %38 = tpu.matmul %37, %2, %cst_14 {dimension_numbers = #tpu.dot_dimension_numbers<[1], [0], [0], [1], [0, 0, 1, 1], [], []>} : vector<8x128xf32>, vector<128x16xf32>, vector<8x16xf32> -> vector<8x16xf32>
    %cst_15 = arith.constant dense<0.000000e+00> : vector<16xf32>
    %39 = vector.multi_reduction <add>, %38, %cst_15 [0] : vector<8x16xf32> to vector<16xf32>
    %40 = vector.shape_cast %39 : vector<16xf32> to vector<1x16xf32>
    %cst_16 = arith.constant 1.250000e-01 : f32
    %41 = vector.broadcast %cst_16 : f32 to vector<1x16xf32>
    %42 = arith.mulf %40, %41 : vector<1x16xf32>
    %43 = arith.mulf %38, %38 : vector<8x16xf32>
    %cst_17 = arith.constant dense<0.000000e+00> : vector<16xf32>
    %44 = vector.multi_reduction <add>, %43, %cst_17 [0] : vector<8x16xf32> to vector<16xf32>
    %45 = vector.shape_cast %44 : vector<16xf32> to vector<1x16xf32>
    %cst_18 = arith.constant 1.250000e-01 : f32
    %46 = vector.broadcast %cst_18 : f32 to vector<1x16xf32>
    %47 = arith.mulf %45, %46 : vector<1x16xf32>
    %48 = arith.mulf %42, %42 : vector<1x16xf32>
    %49 = arith.subf %47, %48 : vector<1x16xf32>
    %cst_19 = arith.constant 0.000000e+00 : f32
    %50 = vector.broadcast %cst_19 : f32 to vector<1x16xf32>
    %51 = arith.maximumf %49, %50 : vector<1x16xf32>
    %cst_20 = arith.constant 9.99999974E-6 : f32
    %52 = vector.broadcast %cst_20 : f32 to vector<1x16xf32>
    %53 = arith.addf %51, %52 : vector<1x16xf32>
    %54 = math.rsqrt %53 : vector<1x16xf32>
    %55 = arith.mulf %8, %54 : vector<1x16xf32>
    %56 = arith.mulf %42, %55 : vector<1x16xf32>
    %57 = arith.subf %9, %56 : vector<1x16xf32>
    %58 = vector.broadcast %55 : vector<1x16xf32> to vector<8x16xf32>
    %59 = arith.mulf %38, %58 : vector<8x16xf32>
    %60 = vector.broadcast %57 : vector<1x16xf32> to vector<8x16xf32>
    %61 = arith.addf %59, %60 : vector<8x16xf32>
    %cst_21 = arith.constant 0.000000e+00 : f32
    %62 = vector.broadcast %cst_21 : f32 to vector<8x16xf32>
    %63 = arith.maximumf %61, %62 : vector<8x16xf32>
    %cst_22 = arith.constant dense<0.000000e+00> : vector<8x128xf32>
    %64 = tpu.matmul %63, %5, %cst_22 {dimension_numbers = #tpu.dot_dimension_numbers<[1], [0], [0], [1], [0, 0, 1, 1], [], []>} : vector<8x16xf32>, vector<16x128xf32>, vector<8x128xf32> -> vector<8x128xf32>
    %cst_23 = arith.constant dense<0.000000e+00> : vector<128xf32>
    %65 = vector.multi_reduction <add>, %64, %cst_23 [0] : vector<8x128xf32> to vector<128xf32>
    %66 = vector.shape_cast %65 : vector<128xf32> to vector<1x128xf32>
    %cst_24 = arith.constant 1.250000e-01 : f32
    %67 = vector.broadcast %cst_24 : f32 to vector<1x128xf32>
    %68 = arith.mulf %66, %67 : vector<1x128xf32>
    %69 = arith.mulf %64, %64 : vector<8x128xf32>
    %cst_25 = arith.constant dense<0.000000e+00> : vector<128xf32>
    %70 = vector.multi_reduction <add>, %69, %cst_25 [0] : vector<8x128xf32> to vector<128xf32>
    %71 = vector.shape_cast %70 : vector<128xf32> to vector<1x128xf32>
    %cst_26 = arith.constant 1.250000e-01 : f32
    %72 = vector.broadcast %cst_26 : f32 to vector<1x128xf32>
    %73 = arith.mulf %71, %72 : vector<1x128xf32>
    %74 = arith.mulf %68, %68 : vector<1x128xf32>
    %75 = arith.subf %73, %74 : vector<1x128xf32>
    %cst_27 = arith.constant 0.000000e+00 : f32
    %76 = vector.broadcast %cst_27 : f32 to vector<1x128xf32>
    %77 = arith.maximumf %75, %76 : vector<1x128xf32>
    %cst_28 = arith.constant 9.99999974E-6 : f32
    %78 = vector.broadcast %cst_28 : f32 to vector<1x128xf32>
    %79 = arith.addf %77, %78 : vector<1x128xf32>
    %80 = math.rsqrt %79 : vector<1x128xf32>
    %81 = arith.mulf %10, %80 : vector<1x128xf32>
    %82 = arith.mulf %68, %81 : vector<1x128xf32>
    %83 = arith.subf %11, %82 : vector<1x128xf32>
    %84 = vector.broadcast %81 : vector<1x128xf32> to vector<8x128xf32>
    %85 = arith.mulf %64, %84 : vector<8x128xf32>
    %86 = vector.broadcast %83 : vector<1x128xf32> to vector<8x128xf32>
    %87 = arith.addf %85, %86 : vector<8x128xf32>
    %cst_29 = arith.constant 0.000000e+00 : f32
    %88 = vector.broadcast %cst_29 : f32 to vector<8x128xf32>
    %89 = arith.maximumf %87, %88 : vector<8x128xf32>
    %c0_30 = arith.constant 0 : index
    %c0_31 = arith.constant 0 : index
    %90 = vector.load %arg4[%c0_30, %c0_31] : memref<8x128xf32, #tpu.memory_space<vmem>>, vector<8x128xf32>
    tpu.vector_store %arg4[%c0_30, %c0_31], %89 {strides = array<i32>} : memref<8x128xf32, #tpu.memory_space<vmem>>, vector<8x128xf32>,
    return
  }
}

</mosaic_0001>

<llo_original>
// kernel: landmark_forward.1
$region0: #{landmark_forward.1}
  #allocation0 [shape = 'u32[]', space=smem, size = 0x4, offset = 0x4, fixed_abs, tag = 'smem constant byte address 0x4 - core index']
  #allocation1 [shape = 'u32[144,128]{1,0:T(1,128)}', space=vmem, size = 0x12000, scoped, tag = 'internal scratch']
  %s0 = inlined_call_operand.vmem [shape: f32[8,8], index: 0, kind: input, shape index: {}]
  %s1 = inlined_call_operand.vmem [shape: f32[24,128], index: 1, kind: input, shape index: {}]
  %s2 = inlined_call_operand.vmem [shape: f32[128,16], index: 2, kind: input, shape index: {}]
  %s3 = inlined_call_operand.vmem [shape: f32[8,128], index: 3, kind: input, shape index: {}]
  %s4 = inlined_call_operand.hbm [shape: f32[8,128], index: 4, kind: output, shape index: {}]
  %s5 = sld [smem:[#allocation0]]
  $region26: #{landmark_forward.1} parent=0
    _
  %s7 = ssub.s32 1, %s5
  %s8 = scalar_select 0, %s7, %s5
  $region1: #{landmark_forward.1} parent=0
    #allocation2 [shape = 'u8[4096]{0}', space=vmem, size = 0x1000, scoped, tag = 'output window, operand 0, single buffered']
    #allocation3 [shape = 's32[1]{0}', space=sflag, size = 0x4, scoped, tag = 'scoped memory for landmark_forward.1']
    %9 = vsyncpa [#allocation3], 0
    // Predicated region
    $region2: #{landmark_forward.1} parent=1 // pred_check
      _
    $region3: #{landmark_forward.1} parent=1 // pred_check_branch
      %11 = sbr.rel (0) target = $region5
    $region4: #{landmark_forward.1} parent=1 // pred_region
      _
    $region5: #{landmark_forward.1} parent=1 // pred_fallthru
      _
    // Predicated region
    $region6: #{landmark_forward.1} parent=1 // pred_check
      _
    $region7: #{landmark_forward.1} parent=1 // pred_check_branch
      %13 = sbr.rel (0) target = $region9
    $region8: #{landmark_forward.1} parent=1 // pred_region
      _
    $region9: #{landmark_forward.1} parent=1 // pred_fallthru
      _
    // Predicated region
    $region10: #{landmark_forward.1} parent=1 // pred_check
      _
    $region11: #{landmark_forward.1} parent=1 // pred_check_branch
      %15 = sbr.rel (0) target = $region13
    $region12: #{landmark_forward.1} parent=1 // pred_region
      _
    $region13: #{landmark_forward.1} parent=1 // pred_fallthru
      _
    // Predicated region
    $region14: #{landmark_forward.1} parent=1 // pred_check
      _
    $region15: #{landmark_forward.1} parent=1 // pred_check_branch
      %17 = sbr.rel (0) target = $region17
    $region16: #{landmark_forward.1} parent=1 // pred_region
      _
    $region17: #{landmark_forward.1} parent=1 // pred_fallthru
      _
    %v18 = vld [vmem:[%s0] sm:$0xff]
    %v19 = vld [vmem:[%s1] sm:$0xff]
    %v20 = vld [vmem:[%s1 + $0x8] sm:$0xff]
    %v21 = vld [vmem:[%s1 + $0x10] sm:$0xff]
    %v22 = vld [vmem:[%s2] sm:$0xff]
    %v23 = vld [vmem:[%s2 + $0x8] sm:$0xff]
    %v24 = vld [vmem:[%s2 + $0x10] sm:$0xff]
    %v25 = vld [vmem:[%s2 + $0x18] sm:$0xff]
    %v26 = vld [vmem:[%s2 + $0x20] sm:$0xff]
    %v27 = vld [vmem:[%s2 + $0x28] sm:$0xff]
    %v28 = vld [vmem:[%s2 + $0x30] sm:$0xff]
    %v29 = vld [vmem:[%s2 + $0x38] sm:$0xff]
    %v30 = vld [vmem:[%s2 + $0x40] sm:$0xff]
    %v31 = vld [vmem:[%s2 + $0x48] sm:$0xff]
    %v32 = vld [vmem:[%s2 + $0x50] sm:$0xff]
    %v33 = vld [vmem:[%s2 + $0x58] sm:$0xff]
    %v34 = vld [vmem:[%s2 + $0x60] sm:$0xff]
    %v35 = vld [vmem:[%s2 + $0x68] sm:$0xff]
    %v36 = vld [vmem:[%s2 + $0x70] sm:$0xff]
    %v37 = vld [vmem:[%s2 + $0x78] sm:$0xff]
    %v38 = vld [vmem:[%s3] sm:$0xff]
    %vm39 = vcmask 64512
    %v41 = vsel %vm39, %v18, 0
    %43 = vmatprep.subr.mxu0 0.0
    %44 = vmatpush1.msra.mxu0 %v19
    %45 = vmatprep.subr.mxu0 0.0
    %46 = vmatpush1.msra.mxu0 0.0
    %47 = vmatprep.subr.mxu0 0.0
    %48 = vmatpush1.msra.mxu0 0.0
    %49 = vmatprep.subr.mxu0 0.0
    %50 = vmatpush1.msra.mxu0 0.0
    %51 = vmatprep.subr.mxu0 0.0
    %52 = vmatpush1.msra.mxu0 0.0
    %53 = vmatprep.subr.mxu0 0.0
    %54 = vmatpush1.msra.mxu0 0.0
    %55 = vmatprep.subr.mxu0 0.0
    %56 = vmatpush1.msra.mxu0 0.0
    %57 = vmatprep.subr.mxu0 0.0
    %58 = vmatpush1.msra.mxu0 0.0
    %59 = vmatprep.subr.mxu0 0.0
    %60 = vmatpush1.msra.mxu0 0.0
    %61 = vmatprep.subr.mxu0 0.0
    %62 = vmatpush1.msra.mxu0 0.0
    %63 = vmatprep.subr.mxu0 0.0
    %64 = vmatpush1.msra.mxu0 0.0
    %65 = vmatprep.subr.mxu0 0.0
    %66 = vmatpush1.msra.mxu0 0.0
    %67 = vmatprep.subr.mxu0 0.0
    %68 = vmatpush1.msra.mxu0 0.0
    %69 = vmatprep.subr.mxu0 0.0
    %70 = vmatpush1.msra.mxu0 0.0
    %71 = vmatprep.subr.mxu0 0.0
    %72 = vmatpush1.msra.mxu0 0.0
    %73 = vmatprep.subr.mxu0 0.0
    %74 = vmatpush1.msra.mxu0 0.0
    %75 = vmatprep.subr.mxu0 0.0
    %76 = vmatpush1.msra.mxu0 0.0
    %77 = vmatprep.subr.mxu0 0.0
    %78 = vmatpush1.msra.mxu0 0.0
    %79 = vmatprep.subr.mxu0 0.0
    %80 = vmatpush1.msra.mxu0 0.0
    %81 = vmatprep.subr.mxu0 0.0
    %82 = vmatpush1.msra.mxu0 0.0
    %83 = vmatprep.subr.mxu0 0.0
    %84 = vmatpush1.msra.mxu0 0.0
    %85 = vmatprep.subr.mxu0 0.0
    %86 = vmatpush1.msra.mxu0 0.0
    %87 = vmatprep.subr.mxu0 0.0
    %88 = vmatpush1.msra.mxu0 0.0
    %89 = vmatprep.subr.mxu0 0.0
    %90 = vmatpush1.msra.mxu0 0.0
    %91 = vmatprep.subr.mxu0 0.0
    %92 = vmatpush1.msra.mxu0 0.0
    %93 = vmatprep.subr.mxu0 0.0
    %94 = vmatpush1.msra.mxu0 0.0
    %95 = vmatprep.subr.mxu0 0.0
    %96 = vmatpush1.msra.mxu0 0.0
    %97 = vmatprep.subr.mxu0 0.0
    %98 = vmatpush1.msra.mxu0 0.0
    %99 = vmatprep.subr.mxu0 0.0
    %100 = vmatpush1.msra.mxu0 0.0
    %101 = vmatprep.subr.mxu0 0.0
    %102 = vmatpush1.msra.mxu0 0.0
    %103 = vmatprep.subr.mxu0 0.0
    %104 = vmatpush1.msra.mxu0 0.0
    %105 = vmatprep.subr.mxu0 0.0
    %106 = vmatpush1.msra.mxu0 0.0
    %107 = vmatprep.mubr.f32.mxu0 0.0
    %108 = vmatmul.mubr.f32.gmra.mrb[0].mxu0 %v41
    %v109 = vpop.f32.mrb[0].mxu0
    %v110 = vadd.f32 0.0, %v109
    %v111 = vpop.f32.mrb[0].mxu0
    %112 = vdwg.mxu0
    %v113 = vrot.slane %v110, 4
    %v114 = vadd.f32 %v110, %v113
    %v115 = vrot.slane %v114, 2
    %v116 = vadd.f32 %v114, %v115
    %v117 = vrot.slane %v116, 1
    %v118 = vadd.f32 %v116, %v117
    %v119 = vmul.f32 %v118, 0.125
    %v120 = vmul.f32 %v110, %v110
    %v121 = vrot.slane %v120, 4
    %v122 = vadd.f32 %v120, %v121
    %v123 = vrot.slane %v122, 2
    %v124 = vadd.f32 %v122, %v123
    %v125 = vrot.slane %v124, 1
    %v126 = vadd.f32 %v124, %v125
    %v127 = vmul.f32 %v126, 0.125
    %v128 = vmul.f32 %v119, %v119
    %v129 = vsub.f32 %v127, %v128
    %v130 = vmax.f32 %v129, 0.0
    %v131 = vadd.f32 %v130, 1e-05
    %v132 = vrsqrt.pop %v131
    %v133 = vmul.f32 %v38, %v132
    %v134 = vmul.f32 %v119, %v133
    %v136 = vrot.slane %v134, 7
    %v138 = vsub.f32 %v38, %v136
    %v139 = vlaneseq
    %v140 = vshrl.u32 %v139, 7
    %v141 = vsub.s32 0, %v140
    %v142 = vrot.slane %v133, %v141
    %v143 = vmul.f32 %v110, %v142
    %v144 = vlaneseq
    %v145 = vshrl.u32 %v144, 7
    %v146 = vsub.s32 1, %v145
    %v147 = vrot.slane %v138, %v146
    %v148 = vadd.f32 %v143, %v147
    %v149 = vmax.f32 %v148, 0.0
    %150 = vmatprep.subr.mxu0 0.0
    %151 = vmatpush1.msra.mxu0 %v22
    %152 = vmatprep.subr.mxu0 0.0
    %153 = vmatpush1.msra.mxu0 %v23
    %154 = vmatprep.subr.mxu0 0.0
    %155 = vmatpush1.msra.mxu0 %v24
    %156 = vmatprep.subr.mxu0 0.0
    %157 = vmatpush1.msra.mxu0 %v25
    %158 = vmatprep.subr.mxu0 0.0
    %159 = vmatpush1.msra.mxu0 %v26
    %160 = vmatprep.subr.mxu0 0.0
    %161 = vmatpush1.msra.mxu0 %v27
    %162 = vmatprep.subr.mxu0 0.0
    %163 = vmatpush1.msra.mxu0 %v28
    %164 = vmatprep.subr.mxu0 0.0
    %165 = vmatpush1.msra.mxu0 %v29
    %166 = vmatprep.subr.mxu0 0.0
    %167 = vmatpush1.msra.mxu0 %v30
    %168 = vmatprep.subr.mxu0 0.0
    %169 = vmatpush1.msra.mxu0 %v31
    %170 = vmatprep.subr.mxu0 0.0
    %171 = vmatpush1.msra.mxu0 %v32
    %172 = vmatprep.subr.mxu0 0.0
    %173 = vmatpush1.msra.mxu0 %v33
    %174 = vmatprep.subr.mxu0 0.0
    %175 = vmatpush1.msra.mxu0 %v34
    %176 = vmatprep.subr.mxu0 0.0
    %177 = vmatpush1.msra.mxu0 %v35
    %178 = vmatprep.subr.mxu0 0.0
    %179 = vmatpush1.msra.mxu0 %v36
    %180 = vmatprep.subr.mxu0 0.0
    %181 = vmatpush1.msra.mxu0 %v37
    %182 = vmatprep.subr.mxu0 0.0
    %183 = vmatpush1.msra.mxu0 0.0
    %184 = vmatprep.subr.mxu0 0.0
    %185 = vmatpush1.msra.mxu0 0.0
    %186 = vmatprep.subr.mxu0 0.0
    %187 = vmatpush1.msra.mxu0 0.0
    %188 = vmatprep.subr.mxu0 0.0
    %189 = vmatpush1.msra.mxu0 0.0
    %190 = vmatprep.subr.mxu0 0.0
    %191 = vmatpush1.msra.mxu0 0.0
    %192 = vmatprep.subr.mxu0 0.0
    %193 = vmatpush1.msra.mxu0 0.0
    %194 = vmatprep.subr.mxu0 0.0
    %195 = vmatpush1.msra.mxu0 0.0
    %196 = vmatprep.subr.mxu0 0.0
    %197 = vmatpush1.msra.mxu0 0.0
    %198 = vmatprep.subr.mxu0 0.0
    %199 = vmatpush1.msra.mxu0 0.0
    %200 = vmatprep.subr.mxu0 0.0
    %201 = vmatpush1.msra.mxu0 0.0
    %202 = vmatprep.subr.mxu0 0.0
    %203 = vmatpush1.msra.mxu0 0.0
    %204 = vmatprep.subr.mxu0 0.0
    %205 = vmatpush1.msra.mxu0 0.0
    %206 = vmatprep.subr.mxu0 0.0
    %207 = vmatpush1.msra.mxu0 0.0
    %208 = vmatprep.subr.mxu0 0.0
    %209 = vmatpush1.msra.mxu0 0.0
    %210 = vmatprep.subr.mxu0 0.0
    %211 = vmatpush1.msra.mxu0 0.0
    %212 = vmatprep.subr.mxu0 0.0
    %213 = vmatpush1.msra.mxu0 0.0
    %214 = vmatprep.mubr.f32.mxu0 0.0
    %215 = vmatmul.mubr.f32.gmra.mrb[0].mxu0 %v149
    %v216 = vpop.f32.mrb[0].mxu0
    %v217 = vadd.f32 0.0, %v216
    %v218 = vpop.f32.mrb[0].mxu0
    %219 = vdwg.mxu0
    %vm220 = vcmask 130048
    %v221 = vsel %vm220, %v217, 0.0
    %v222 = vrot.slane %v221, 4
    %v223 = vadd.f32 %v221, %v222
    %v224 = vrot.slane %v223, 2
    %v225 = vadd.f32 %v223, %v224
    %v226 = vrot.slane %v225, 1
    %v227 = vadd.f32 %v225, %v226
    %v228 = vmul.f32 %v227, 0.125
    %v229 = vmul.f32 %v217, %v217
    %v230 = vsel %vm220, %v229, 0.0
    %v231 = vrot.slane %v230, 4
    %v232 = vadd.f32 %v230, %v231
    %v233 = vrot.slane %v232, 2
    %v234 = vadd.f32 %v232, %v233
    %v235 = vrot.slane %v234, 1
    %v236 = vadd.f32 %v234, %v235
    %v237 = vmul.f32 %v236, 0.125
    %v238 = vmul.f32 %v228, %v228
    %v239 = vsub.f32 %v237, %v238
    %v240 = vmax.f32 %v239, 0.0
    %v241 = vadd.f32 %v240, 1e-05
    %v242 = vrsqrt.pop %v241
    %v243 = vmul.f32 %v38, %v242
    %v244 = vmul.f32 %v228, %v243
    %v246 = vrot.slane %v244, 7
    %v248 = vsub.f32 %v38, %v246
    %v249 = vlaneseq
    %v250 = vshrl.u32 %v249, 7
    %v251 = vsub.s32 2, %v250
    %v252 = vrot.slane %v243, %v251
    %v253 = vmul.f32 %v217, %v252
    %v254 = vlaneseq
    %v255 = vshrl.u32 %v254, 7
    %v256 = vsub.s32 3, %v255
    %v257 = vrot.slane %v248, %v256
    %v258 = vadd.f32 %v253, %v257
    %v259 = vmax.f32 %v258, 0.0
    %v261 = vsel %vm220, %v259, 0
    %263 = vmatprep.subr.mxu0 0.0
    %264 = vmatpush1.msra.mxu0 %v20
    %265 = vmatprep.subr.mxu0 0.0
    %266 = vmatpush1.msra.mxu0 %v21
    %267 = vmatprep.subr.mxu0 0.0
    %268 = vmatpush1.msra.mxu0 0.0
    %269 = vmatprep.subr.mxu0 0.0
    %270 = vmatpush1.msra.mxu0 0.0
    %271 = vmatprep.subr.mxu0 0.0
    %272 = vmatpush1.msra.mxu0 0.0
    %273 = vmatprep.subr.mxu0 0.0
    %274 = vmatpush1.msra.mxu0 0.0
    %275 = vmatprep.subr.mxu0 0.0
    %276 = vmatpush1.msra.mxu0 0.0
    %277 = vmatprep.subr.mxu0 0.0
    %278 = vmatpush1.msra.mxu0 0.0
    %279 = vmatprep.subr.mxu0 0.0
    %280 = vmatpush1.msra.mxu0 0.0
    %281 = vmatprep.subr.mxu0 0.0
    %282 = vmatpush1.msra.mxu0 0.0
    %283 = vmatprep.subr.mxu0 0.0
    %284 = vmatpush1.msra.mxu0 0.0
    %285 = vmatprep.subr.mxu0 0.0
    %286 = vmatpush1.msra.mxu0 0.0
    %287 = vmatprep.subr.mxu0 0.0
    %288 = vmatpush1.msra.mxu0 0.0
    %289 = vmatprep.subr.mxu0 0.0
    %290 = vmatpush1.msra.mxu0 0.0
    %291 = vmatprep.subr.mxu0 0.0
    %292 = vmatpush1.msra.mxu0 0.0
    %293 = vmatprep.subr.mxu0 0.0
    %294 = vmatpush1.msra.mxu0 0.0
    %295 = vmatprep.subr.mxu0 0.0
    %296 = vmatpush1.msra.mxu0 0.0
    %297 = vmatprep.subr.mxu0 0.0
    %298 = vmatpush1.msra.mxu0 0.0
    %299 = vmatprep.subr.mxu0 0.0
    %300 = vmatpush1.msra.mxu0 0.0
    %301 = vmatprep.subr.mxu0 0.0
    %302 = vmatpush1.msra.mxu0 0.0
    %303 = vmatprep.subr.mxu0 0.0
    %304 = vmatpush1.msra.mxu0 0.0
    %305 = vmatprep.subr.mxu0 0.0
    %306 = vmatpush1.msra.mxu0 0.0
    %307 = vmatprep.subr.mxu0 0.0
    %308 = vmatpush1.msra.mxu0 0.0
    %309 = vmatprep.subr.mxu0 0.0
    %310 = vmatpush1.msra.mxu0 0.0
    %311 = vmatprep.subr.mxu0 0.0
    %312 = vmatpush1.msra.mxu0 0.0
    %313 = vmatprep.subr.mxu0 0.0
    %314 = vmatpush1.msra.mxu0 0.0
    %315 = vmatprep.subr.mxu0 0.0
    %316 = vmatpush1.msra.mxu0 0.0
    %317 = vmatprep.subr.mxu0 0.0
    %318 = vmatpush1.msra.mxu0 0.0
    %319 = vmatprep.subr.mxu0 0.0
    %320 = vmatpush1.msra.mxu0 0.0
    %321 = vmatprep.subr.mxu0 0.0
    %322 = vmatpush1.msra.mxu0 0.0
    %323 = vmatprep.subr.mxu0 0.0
    %324 = vmatpush1.msra.mxu0 0.0
    %325 = vmatprep.subr.mxu0 0.0
    %326 = vmatpush1.msra.mxu0 0.0
    %327 = vmatprep.mubr.f32.mxu0 0.0
    %328 = vmatmul.mubr.f32.gmra.mrb[0].mxu0 %v261
    %v329 = vpop.f32.mrb[0].mxu0
    %v330 = vadd.f32 0.0, %v329
    %v331 = vpop.f32.mrb[0].mxu0
    %332 = vdwg.mxu0
    %v333 = vrot.slane %v330, 4
    %v334 = vadd.f32 %v330, %v333
    %v335 = vrot.slane %v334, 2
    %v336 = vadd.f32 %v334, %v335
    %v337 = vrot.slane %v336, 1
    %v338 = vadd.f32 %v336, %v337
    %v339 = vmul.f32 %v338, 0.125
    %v340 = vmul.f32 %v330, %v330
    %v341 = vrot.slane %v340, 4
    %v342 = vadd.f32 %v340, %v341
    %v343 = vrot.slane %v342, 2
    %v344 = vadd.f32 %v342, %v343
    %v345 = vrot.slane %v344, 1
    %v346 = vadd.f32 %v344, %v345
    %v347 = vmul.f32 %v346, 0.125
    %v348 = vmul.f32 %v339, %v339
    %v349 = vsub.f32 %v347, %v348
    %v350 = vmax.f32 %v349, 0.0
    %v351 = vadd.f32 %v350, 1e-05
    %v352 = vrsqrt.pop %v351
    %v353 = vmul.f32 %v38, %v352
    %v354 = vmul.f32 %v339, %v353
    %v356 = vrot.slane %v354, 7
    %v358 = vsub.f32 %v38, %v356
    %v359 = vlaneseq
    %v360 = vshrl.u32 %v359, 7
    %v361 = vsub.s32 4, %v360
    %v362 = vrot.slane %v353, %v361
    %v363 = vmul.f32 %v330, %v362
    %v364 = vlaneseq
    %v365 = vshrl.u32 %v364, 7
    %v366 = vsub.s32 5, %v365
    %v367 = vrot.slane %v358, %v366
    %v368 = vadd.f32 %v363, %v367
    %v369 = vmax.f32 %v368, 0.0
    %370 = vst [vmem:[#allocation2] sm:$0xff] %v369
    // Predicated region
    $region18: #{landmark_forward.1} parent=1 // pred_check
      _
    $region19: #{landmark_forward.1} parent=1 // pred_check_branch
      %372 = sbr.rel (0) target = $region21
    $region20: #{landmark_forward.1} parent=1 // pred_region
      %s374 = ssub.s32 128, 128
      %375 = vsyncadd [#allocation3], %s374
      %s377 = sshll.u32 [#allocation2], 4
      %s378 = int_to_ptr.vmem [resolvable:$true] %s377
      %380 = dma.vmem_to_hbm [thread:$0]  %s378, 128, %s4, [#allocation3]
    $region21: #{landmark_forward.1} parent=1 // pred_fallthru
      _
    // Predicated region
    $region22: #{landmark_forward.1} parent=1 // pred_check
      _
    $region23: #{landmark_forward.1} parent=1 // pred_check_branch
      %382 = sbr.rel (0) target = $region25
    $region24: #{landmark_forward.1} parent=1 // pred_region
      %383 = dma.done [#allocation3], 128
    $region25: #{landmark_forward.1} parent=1 // pred_fallthru
      _
    %384 = vsyncpa [#allocation3], 1

</llo_original>
